<compile_context>
chip_gen: v7x
topology: tpu7x:2x2x1
jax: 0.10.0
libtpu: 0.0.40
codegen_flags: <defaults>
</compile_context>

<pallas_src>
import jax
import jax.numpy as jnp
from jax.experimental import pallas as pl
from jax.experimental.pallas import tpu as pltpu


def _perceptron_kernel(x_ref, w_ref, b_ref, o_ref):
    # x_ref: (TB, Fp) VMEM   w_ref: (Fp, G) VMEM   b_ref: (1, 1) SMEM   o_ref: (TB, G)
    z = jnp.dot(x_ref[...], w_ref[...], preferred_element_type=jnp.float32)
    z = z + b_ref[0, 0]
    # Exact sigmoid: exp and the divide both stay off the critical DMA path.
    o_ref[...] = (1.0 / (1.0 + jnp.exp(-z))).astype(o_ref.dtype)


_VMEM_X_BUDGET = 16 * 1024 * 1024   # both in-flight (double-buffered) x tiles together
_VMEM_LIMIT = 32 * 1024 * 1024      # explicit scoped-VMEM limit (covers v5e's 16 MiB default)


def _pick_row_tile(rows, lane_padded_row_bytes):
    """Largest row tile whose two in-flight f32 x buffers fit the budget,
    counted in lane-padded VMEM bytes; kept a multiple of 8 for partial blocks
    and capped so the grid keeps >= 4 steps (v7x megacore)."""
    tb = max(1, _VMEM_X_BUDGET // (2 * lane_padded_row_bytes))
    tb = min(tb, max(8, pl.cdiv(rows, 4)))
    if tb >= rows:
        return rows
    return max(8, (tb // 8) * 8)


def perceptron_forward(x, w, b, *, block_rows=None):
    """x: [B, F], w: [1, F] (torch nn.Linear weight layout), b: [1, 1]
    -> sigmoid(x @ w.T + b): [B, 1] float32."""
    B, F = x.shape
    x = x.astype(jnp.float32)
    w = jnp.asarray(w, jnp.float32).reshape(1, F)
    b = jnp.asarray(b, jnp.float32).reshape(1, 1)

    # Lane packing for small feature dims (pure reshape view -> no extra HBM traffic).
    pack_ok = F < 128 and 128 % F == 0 and B % (128 // F) == 0
    g = (128 // F) if pack_ok else 1
    if g > 1:
        rows, fp = B // g, g * F                      # fp == 128
        x_k = x.reshape(rows, fp)
        eye = jnp.eye(g, dtype=jnp.float32)
        # Block-diagonal weight: w_k[j*F + k, j] = w[k]
        w_k = (eye[:, None, :] * w.reshape(F)[None, :, None]).reshape(fp, g)
    else:
        rows, fp = B, F
        x_k = x
        w_k = w.reshape(F, 1)

    lane_padded_row_bytes = pl.cdiv(fp, 128) * 128 * 4   # f32, lanes padded to 128
    tb = _pick_row_tile(rows, lane_padded_row_bytes) if block_rows is None else block_rows
    num_tiles = pl.cdiv(rows, tb)

    out = pl.pallas_call(
        _perceptron_kernel,
        out_shape=jax.ShapeDtypeStruct((rows, g), jnp.float32),
        grid=(num_tiles,),
        in_specs=[
            pl.BlockSpec((tb, fp), lambda i: (i, 0)),   # streamed, double-buffered x tiles
            pl.BlockSpec((fp, g), lambda i: (0, 0)),    # weight stays resident in VMEM
            pl.BlockSpec(memory_space=pltpu.SMEM),      # scalar bias on the scalar path
        ],
        out_specs=pl.BlockSpec((tb, g), lambda i: (i, 0)),
        compiler_params=pltpu.CompilerParams(
            dimension_semantics=("parallel",),          # megacore-shard the batch axis
            vmem_limit_bytes=_VMEM_LIMIT,
        ),
    )(x_k, w_k, b)

    # Packed output (r, j) corresponds to original row r*g + j (row-major), so a
    # plain reshape restores ordering; [:B] is a no-op unless g == 1 trivially.
    return out.reshape(rows * g, 1)[:B]


if __name__ == "__main__":
    key = jax.random.PRNGKey(0)
    kx1, kx2, kx3, kw1, kb1, kw3, kb3 = jax.random.split(key, 7)

    def linear_init(kw, kb, f):
        # nn.Linear-style init: U(-1/sqrt(F), 1/sqrt(F)); weight layout (out=1, in=F).
        bound = 1.0 / (float(f) ** 0.5)
        w = jax.random.uniform(kw, (1, f), jnp.float32, -bound, bound)
        b = jax.random.uniform(kb, (1, 1), jnp.float32, -bound, bound)
        return w, b

    def ref(x, w, b):
        return jax.nn.sigmoid(x @ w.T + b)

    # Case 1: F=32, B=8 -> lane-packed path (g=4), single tile.
    F1 = 32
    w1, b1 = linear_init(kw1, kb1, F1)
    x1 = jax.random.normal(kx1, (8, F1), jnp.float32)
    o1 = jax.block_until_ready(perceptron_forward(x1, w1, b1))
    r1 = ref(x1, w1, b1)
    assert o1.shape == (8, 1)
    assert jnp.allclose(o1, r1, atol=1e-4, rtol=1e-4), float(jnp.max(jnp.abs(o1 - r1)))

    # Case 2: F=32, B=300 -> lane-packed, multi-tile grid with ragged last block
    # (exercises Pallas last-block clipping; no jnp.pad of x).
    x2 = jax.random.normal(kx2, (300, F1), jnp.float32)
    o2 = jax.block_until_ready(perceptron_forward(x2, w1, b1, block_rows=16))
    r2 = ref(x2, w1, b1)
    assert o2.shape == (300, 1)
    assert jnp.allclose(o2, r2, atol=1e-4, rtol=1e-4), float(jnp.max(jnp.abs(o2 - r2)))

    # Case 3: F=48 (128 % F != 0), B=10 -> unpacked MXU path, ragged grid.
    F3 = 48
    w3, b3 = linear_init(kw3, kb3, F3)
    x3 = jax.random.normal(kx3, (10, F3), jnp.float32)
    o3 = jax.block_until_ready(perceptron_forward(x3, w3, b3))
    r3 = ref(x3, w3, b3)
    assert o3.shape == (10, 1)
    assert jnp.allclose(o3, r3, atol=1e-4, rtol=1e-4), float(jnp.max(jnp.abs(o3 - r3)))

    print("KERNEL_OK")
</pallas_src>

<mosaic_0001>
module attributes {stable_mosaic.version = 11 : i64} {
  func.func @_perceptron_kernel(%arg0: i32, %arg1: memref<2x128xf32, #tpu.memory_space<vmem>>, %arg2: memref<128x4xf32, #tpu.memory_space<vmem>>, %arg3: memref<1x1xf32, #tpu.memory_space<smem>>, %arg4: memref<2x4xf32, #tpu.memory_space<vmem>>) attributes {dimension_semantics = [#tpu.dimension_semantics<parallel>], iteration_bounds = array<i64: 1>, scalar_prefetch = 0 : i64, scratch_operands = 0 : i64, tpu.core_type = #tpu.core_type<tc>, window_params = [{transform_indices = @transform_0, window_bounds = array<i64: 2, 128>}, {pipeline_mode = #tpu.pipeline_mode<synchronous>, transform_indices = @transform_1, window_bounds = array<i64: 128, 4>}, {transform_indices = @transform_2, window_bounds = array<i64: 1, 1>}, {transform_indices = @transform_3, window_bounds = array<i64: 2, 4>}]} {
    %c0 = arith.constant 0 : index
    %c0_0 = arith.constant 0 : index
    %0 = vector.load %arg1[%c0, %c0_0] : memref<2x128xf32, #tpu.memory_space<vmem>>, vector<2x128xf32>
    %c0_1 = arith.constant 0 : index
    %c0_2 = arith.constant 0 : index
    %1 = vector.load %arg2[%c0_1, %c0_2] : memref<128x4xf32, #tpu.memory_space<vmem>>, vector<128x4xf32>
    %cst = arith.constant dense<0.000000e+00> : vector<2x4xf32>
    %2 = tpu.matmul %0, %1, %cst {dimension_numbers = #tpu.dot_dimension_numbers<[1], [0], [0], [1], [0, 0, 1, 1], [], []>} : vector<2x128xf32>, vector<128x4xf32>, vector<2x4xf32> -> vector<2x4xf32>
    %c0_3 = arith.constant 0 : index
    %c0_4 = arith.constant 0 : index
    %3 = memref.load %arg3[%c0_3, %c0_4] : memref<1x1xf32, #tpu.memory_space<smem>>
    %4 = vector.broadcast %3 : f32 to vector<2x4xf32>
    %5 = arith.addf %2, %4 : vector<2x4xf32>
    %cst_5 = arith.constant 0.000000e+00 : f32
    %6 = vector.broadcast %cst_5 : f32 to vector<2x4xf32>
    %7 = arith.subf %6, %5 : vector<2x4xf32>
    %8 = math.exp %7 : vector<2x4xf32>
    %cst_6 = arith.constant 1.000000e+00 : f32
    %9 = vector.broadcast %cst_6 : f32 to vector<2x4xf32>
    %10 = arith.addf %9, %8 : vector<2x4xf32>
    %cst_7 = arith.constant 1.000000e+00 : f32
    %11 = vector.broadcast %cst_7 : f32 to vector<2x4xf32>
    %12 = arith.divf %11, %10 : vector<2x4xf32>
    %c0_8 = arith.constant 0 : index
    %c0_9 = arith.constant 0 : index
    %13 = vector.load %arg4[%c0_8, %c0_9] : memref<2x4xf32, #tpu.memory_space<vmem>>, vector<2x4xf32>
    tpu.vector_store %arg4[%c0_8, %c0_9], %12 {strides = array<i32>} : memref<2x4xf32, #tpu.memory_space<vmem>>, vector<2x4xf32>,
    return
  }
  func.func @transform_0(%arg0: i32) -> (i32, i32) {
    %c0_i32 = arith.constant 0 : i32
    %c0_i32_0 = arith.constant 0 : i32
    return %arg0, %c0_i32 : i32, i32
  }
  func.func @transform_1(%arg0: i32) -> (i32, i32) {
    %c0_i32 = arith.constant 0 : i32
    %c0_i32_0 = arith.constant 0 : i32
    %c0_i32_1 = arith.constant 0 : i32
    return %c0_i32, %c0_i32_0 : i32, i32
  }
  func.func @transform_2(%arg0: i32) -> (i32, i32) {
    %c0_i32 = arith.constant 0 : i32
    %c0_i32_0 = arith.constant 0 : i32
    %c0_i32_1 = arith.constant 0 : i32
    return %c0_i32, %c0_i32_0 : i32, i32
  }
  func.func @transform_3(%arg0: i32) -> (i32, i32) {
    %c0_i32 = arith.constant 0 : i32
    %c0_i32_0 = arith.constant 0 : i32
    return %arg0, %c0_i32 : i32, i32
  }
}

</mosaic_0001>

<llo_original>
// kernel: tpu_custom_call.1
$region0: #{tpu_custom_call.1}
  #allocation0 [shape = 'u32[]', space=smem, size = 0x4, offset = 0x4, fixed_abs, tag = 'smem constant byte address 0x4 - core index']
  #allocation1 [shape = 'u32[144,128]{1,0:T(1,128)}', space=vmem, size = 0x12000, scoped, tag = 'internal scratch']
  #allocation2 [shape = 'f32[1,1]{1,0:T(1,128)S(6)}', space=smem, size = 0x200, scoped, tag = 'scoped memory for tpu_custom_call.1']
  %s0 = inlined_call_operand.vmem [shape: f32[2,128], index: 0, kind: input, shape index: {}]
  %s1 = inlined_call_operand.vmem [shape: f32[128,4], index: 1, kind: input, shape index: {}]
  %s2 = inlined_call_operand.<no memory space> [shape: f32[1,1], index: 2, kind: input, shape index: {}]
  %s3 = inlined_call_operand.hbm [shape: f32[2,4], index: 3, kind: output, shape index: {}]
  %s4 = sld [smem:[#allocation0]]
  $region22: #{tpu_custom_call.1} parent=0
    _
  %s6 = ssub.s32 1, %s4
  %s7 = scalar_select 0, %s6, %s4
  %8 = sst [smem:[#allocation2]] %s2
  $region1: #{tpu_custom_call.1} parent=0
    #allocation3 [shape = 'u8[1024]{0}', space=vmem, size = 0x400, scoped, tag = 'output window, operand 0, single buffered']
    #allocation4 [shape = 's32[1]{0}', space=sflag, size = 0x4, scoped, tag = 'scoped memory for tpu_custom_call.1']
    %9 = vsyncpa [#allocation4], 0
    // Predicated region
    $region2: #{tpu_custom_call.1} parent=1 // pred_check
      _
    $region3: #{tpu_custom_call.1} parent=1 // pred_check_branch
      %11 = sbr.rel (0) target = $region5
    $region4: #{tpu_custom_call.1} parent=1 // pred_region
      _
    $region5: #{tpu_custom_call.1} parent=1 // pred_fallthru
      _
    // Predicated region
    $region6: #{tpu_custom_call.1} parent=1 // pred_check
      _
    $region7: #{tpu_custom_call.1} parent=1 // pred_check_branch
      %13 = sbr.rel (0) target = $region9
    $region8: #{tpu_custom_call.1} parent=1 // pred_region
      _
    $region9: #{tpu_custom_call.1} parent=1 // pred_fallthru
      _
    // Predicated region
    $region10: #{tpu_custom_call.1} parent=1 // pred_check
      _
    $region11: #{tpu_custom_call.1} parent=1 // pred_check_branch
      %15 = sbr.rel (0) target = $region13
    $region12: #{tpu_custom_call.1} parent=1 // pred_region
      _
    $region13: #{tpu_custom_call.1} parent=1 // pred_fallthru
      _
    %v16 = vld [vmem:[%s0] sm:$0x3]
    %v17 = vld [vmem:[%s1] sm:$0xff]
    %v18 = vld [vmem:[%s1 + $0x8] sm:$0xff]
    %v19 = vld [vmem:[%s1 + $0x10] sm:$0xff]
    %v20 = vld [vmem:[%s1 + $0x18] sm:$0xff]
    %v21 = vld [vmem:[%s1 + $0x20] sm:$0xff]
    %v22 = vld [vmem:[%s1 + $0x28] sm:$0xff]
    %v23 = vld [vmem:[%s1 + $0x30] sm:$0xff]
    %v24 = vld [vmem:[%s1 + $0x38] sm:$0xff]
    %v25 = vld [vmem:[%s1 + $0x40] sm:$0xff]
    %v26 = vld [vmem:[%s1 + $0x48] sm:$0xff]
    %v27 = vld [vmem:[%s1 + $0x50] sm:$0xff]
    %v28 = vld [vmem:[%s1 + $0x58] sm:$0xff]
    %v29 = vld [vmem:[%s1 + $0x60] sm:$0xff]
    %v30 = vld [vmem:[%s1 + $0x68] sm:$0xff]
    %v31 = vld [vmem:[%s1 + $0x70] sm:$0xff]
    %v32 = vld [vmem:[%s1 + $0x78] sm:$0xff]
    %s33 = sld [smem:[#allocation2]]
    %v34 = vstv %s33
    %35 = vmatprep.subr.mxu0 0.0
    %36 = vmatpush1.msra.mxu0 %v17
    %37 = vmatprep.subr.mxu0 0.0
    %38 = vmatpush1.msra.mxu0 %v18
    %39 = vmatprep.subr.mxu0 0.0
    %40 = vmatpush1.msra.mxu0 %v19
    %41 = vmatprep.subr.mxu0 0.0
    %42 = vmatpush1.msra.mxu0 %v20
    %43 = vmatprep.subr.mxu0 0.0
    %44 = vmatpush1.msra.mxu0 %v21
    %45 = vmatprep.subr.mxu0 0.0
    %46 = vmatpush1.msra.mxu0 %v22
    %47 = vmatprep.subr.mxu0 0.0
    %48 = vmatpush1.msra.mxu0 %v23
    %49 = vmatprep.subr.mxu0 0.0
    %50 = vmatpush1.msra.mxu0 %v24
    %51 = vmatprep.subr.mxu0 0.0
    %52 = vmatpush1.msra.mxu0 %v25
    %53 = vmatprep.subr.mxu0 0.0
    %54 = vmatpush1.msra.mxu0 %v26
    %55 = vmatprep.subr.mxu0 0.0
    %56 = vmatpush1.msra.mxu0 %v27
    %57 = vmatprep.subr.mxu0 0.0
    %58 = vmatpush1.msra.mxu0 %v28
    %59 = vmatprep.subr.mxu0 0.0
    %60 = vmatpush1.msra.mxu0 %v29
    %61 = vmatprep.subr.mxu0 0.0
    %62 = vmatpush1.msra.mxu0 %v30
    %63 = vmatprep.subr.mxu0 0.0
    %64 = vmatpush1.msra.mxu0 %v31
    %65 = vmatprep.subr.mxu0 0.0
    %66 = vmatpush1.msra.mxu0 %v32
    %67 = vmatprep.subr.mxu0 0.0
    %68 = vmatpush1.msra.mxu0 0.0
    %69 = vmatprep.subr.mxu0 0.0
    %70 = vmatpush1.msra.mxu0 0.0
    %71 = vmatprep.subr.mxu0 0.0
    %72 = vmatpush1.msra.mxu0 0.0
    %73 = vmatprep.subr.mxu0 0.0
    %74 = vmatpush1.msra.mxu0 0.0
    %75 = vmatprep.subr.mxu0 0.0
    %76 = vmatpush1.msra.mxu0 0.0
    %77 = vmatprep.subr.mxu0 0.0
    %78 = vmatpush1.msra.mxu0 0.0
    %79 = vmatprep.subr.mxu0 0.0
    %80 = vmatpush1.msra.mxu0 0.0
    %81 = vmatprep.subr.mxu0 0.0
    %82 = vmatpush1.msra.mxu0 0.0
    %83 = vmatprep.subr.mxu0 0.0
    %84 = vmatpush1.msra.mxu0 0.0
    %85 = vmatprep.subr.mxu0 0.0
    %86 = vmatpush1.msra.mxu0 0.0
    %87 = vmatprep.subr.mxu0 0.0
    %88 = vmatpush1.msra.mxu0 0.0
    %89 = vmatprep.subr.mxu0 0.0
    %90 = vmatpush1.msra.mxu0 0.0
    %91 = vmatprep.subr.mxu0 0.0
    %92 = vmatpush1.msra.mxu0 0.0
    %93 = vmatprep.subr.mxu0 0.0
    %94 = vmatpush1.msra.mxu0 0.0
    %95 = vmatprep.subr.mxu0 0.0
    %96 = vmatpush1.msra.mxu0 0.0
    %97 = vmatprep.subr.mxu0 0.0
    %98 = vmatpush1.msra.mxu0 0.0
    %99 = vmatprep.mubr.f32.mxu0 0.0
    %100 = vmatmul.mubr.f32.gmra.mrb[0].mxu0 %v16
    %v101 = vpop.f32.mrb[0].mxu0
    %v102 = vadd.f32 %v34, %v101
    %v103 = vpop.f32.mrb[0].mxu0
    %104 = vdwg.mxu0
    %v105 = vsub.f32 0.0, %v102
    %v106 = vmul.f32 %v105, 1.442695
    %v107 = vpow.pop %v106
    %v108 = vadd.f32 %v107, 1.0
    %v109 = vrcp.pop %v108
    %v110 = vmul.f32 1.0, %v109
    %vm111 = vcmask 25600
    %112 = vst.msk [vmem:[#allocation3] sm:$0x3] %vm111, %v110
    // Predicated region
    $region14: #{tpu_custom_call.1} parent=1 // pred_check
      _
    $region15: #{tpu_custom_call.1} parent=1 // pred_check_branch
      %114 = sbr.rel (0) target = $region17
    $region16: #{tpu_custom_call.1} parent=1 // pred_region
      %s116 = ssub.s32 32, 32
      %117 = vsyncadd [#allocation4], %s116
      %s119 = sshll.u32 [#allocation3], 4
      %s120 = int_to_ptr.vmem [resolvable:$true] %s119
      %122 = dma.vmem_to_hbm [thread:$0]  %s120, 32, %s3, [#allocation4]
    $region17: #{tpu_custom_call.1} parent=1 // pred_fallthru
      _
    // Predicated region
    $region18: #{tpu_custom_call.1} parent=1 // pred_check
      _
    $region19: #{tpu_custom_call.1} parent=1 // pred_check_branch
      %124 = sbr.rel (0) target = $region21
    $region20: #{tpu_custom_call.1} parent=1 // pred_region
      %125 = dma.done [#allocation4], 32
    $region21: #{tpu_custom_call.1} parent=1 // pred_fallthru
      _
    %126 = vsyncpa [#allocation4], 1

</llo_original>
